<compile_context>
chip_gen: v7x
topology: tpu7x:2x2x1
jax: 0.10.0
libtpu: 0.0.40
codegen_flags: <defaults>
</compile_context>

<pallas_src>
import jax
import jax.numpy as jnp
from jax.experimental import pallas as pl
from jax.experimental.pallas import tpu as pltpu


def _round_up(a, m):
    return -(-a // m) * m


# ---------------------------------------------------------------------------
# Kernel
# ---------------------------------------------------------------------------
def branch_kernel(x_ref, j_ref, wx_ref, wj_ref, bcat_ref, w2_ref, b2_ref,
                  wout_ref, bout_ref, out_ref):
    Cp = w2_ref.shape[0]                        # lane-padded hidden width (multiple of 128)

    x = x_ref[...].astype(jnp.bfloat16)         # (bn, C)
    j = j_ref[...].astype(jnp.bfloat16)         # (bn, R)

    # Fused slab over x: first Cp lanes = BN-folded fc1 pre-activation,
    # last Cp lanes = x-part of the shortcut.  Bias added in f32.
    z = jnp.dot(x, wx_ref[...], preferred_element_type=jnp.float32) + bcat_ref[...]

    h = jnp.maximum(z[:, :Cp], 0.0)             # relu(bn1(fc1(x)))       (dropout = id)
    # shortcut: add the joint_sc contribution with a small accumulating dot (K = R)
    a = z[:, Cp:] + jnp.dot(j, wj_ref[...], preferred_element_type=jnp.float32)

    # relu(bn2(fc2(h)))  (BN folded into w2/b2, dropout = id)
    h = jnp.maximum(
        jnp.dot(h.astype(jnp.bfloat16), w2_ref[...],
                preferred_element_type=jnp.float32) + b2_ref[...], 0.0)

    # out(h + a) -- compact O-wide output, no padded columns
    y = jnp.dot((h + a).astype(jnp.bfloat16), wout_ref[...],
                preferred_element_type=jnp.float32) + bout_ref[...]
    out_ref[...] = y.astype(out_ref.dtype)


# ---------------------------------------------------------------------------
# Wrapper
# ---------------------------------------------------------------------------
def branch_forward(x, joint_sc, kp, *, out_channels, block_n=None):
    N, C = x.shape
    R = joint_sc.shape[-1]
    Cp = kp["w2"].shape[0]
    O = out_channels

    # >=2 grid steps when possible (megacore on v7x), capped at 1024 rows per block.
    if block_n is None:
        block_n = min(1024, max(8, _round_up(-(-N // 2), 8)))

    # Ragged batch: zero-pad rows up to a multiple of block_n (sliced off below).
    N_pad = _round_up(N, block_n)
    if N_pad != N:
        x = jnp.pad(x, ((0, N_pad - N), (0, 0)))
        joint_sc = jnp.pad(joint_sc, ((0, N_pad - N), (0, 0)))

    def full(shape):
        nd = len(shape)
        return pl.BlockSpec(shape, lambda i, nd=nd: (0,) * nd)

    in_specs = [
        pl.BlockSpec((block_n, C), lambda i: (i, 0)),   # x rows
        pl.BlockSpec((block_n, R), lambda i: (i, 0)),   # joint_sc rows
        full((C, 2 * Cp)),        # fused fc1(BN-folded) + shortcut-x weight slab (bf16)
        full((R, Cp)),            # shortcut weight for joint_sc                  (bf16)
        full((1, 2 * Cp)),        # fused bias (f32)
        full((Cp, Cp)),           # fc2 weight (BN-folded, bf16)
        full((1, Cp)),            # fc2 bias   (BN-folded, f32)
        full((Cp, O)),            # out weight (bf16), compact output columns
        full((1, O)),             # out bias   (f32)
    ]

    # Advisory cost estimate (per padded batch).
    flops = 2 * N_pad * (C * 2 * Cp + R * Cp + Cp * Cp + Cp * O)
    bytes_accessed = (
        N_pad * (C + R) * 4 + N_pad * O * 4                      # activations in/out
        + (C * 2 * Cp + R * Cp + Cp * Cp + Cp * O) * 2           # bf16 weights
        + (2 * Cp + Cp + O) * 4                                  # f32 biases
    )

    y = pl.pallas_call(
        branch_kernel,
        out_shape=jax.ShapeDtypeStruct((N_pad, O), x.dtype),
        grid_spec=pltpu.PrefetchScalarGridSpec(
            num_scalar_prefetch=0,
            grid=(N_pad // block_n,),
            in_specs=in_specs,
            out_specs=pl.BlockSpec((block_n, O), lambda i: (i, 0)),
        ),
        compiler_params=pltpu.CompilerParams(
            dimension_semantics=("parallel",)),
        cost_estimate=pl.CostEstimate(flops=flops, transcendentals=0,
                                      bytes_accessed=bytes_accessed),
    )(x, joint_sc, kp["wx"], kp["wj"], kp["bcat"], kp["w2"], kp["b2"],
      kp["wout"], kp["bout"])

    return y[:N] if N_pad != N else y


# ---------------------------------------------------------------------------
# Parameter prep: fold eval-mode BN, fuse fc1 + shortcut-x, pad hidden to 128 lanes,
# store MXU operands in bf16 (biases stay f32).
# ---------------------------------------------------------------------------
def _pad2(a, rows, cols):
    return jnp.pad(a, ((0, rows - a.shape[0]), (0, cols - a.shape[1])))


def fold_and_pad_params(p, in_channels, res_channels, out_channels, lane=128):
    C, R, O = in_channels, res_channels, out_channels
    Cp = _round_up(C, lane)

    # Fold eval-mode BatchNorm into the Linear weights/biases.
    w1f = p["w1_t"] * p["bn1_scale"]                       # column scale, (C, C)
    b1f = p["b1"] * p["bn1_scale"] + p["bn1_shift"]        # (1, C)
    w2f = p["w2_t"] * p["bn2_scale"]
    b2f = p["b2"] * p["bn2_scale"] + p["bn2_shift"]

    # Fused slab over x:  x @ [w1f | wsc_x]  ->  [fc1_pre | shortcut_x]
    wx = jnp.concatenate([_pad2(w1f, C, Cp), _pad2(p["wsc_x_t"], C, Cp)], axis=1)
    bcat = jnp.concatenate([_pad2(b1f, 1, Cp), _pad2(p["bsc"], 1, Cp)], axis=1)
    wj = _pad2(p["wsc_j_t"], R, Cp)                        # joint_sc -> shortcut half only

    return {
        "wx": wx.astype(jnp.bfloat16),
        "wj": wj.astype(jnp.bfloat16),
        "bcat": bcat,                                      # f32
        "w2": _pad2(w2f, Cp, Cp).astype(jnp.bfloat16),
        "b2": _pad2(b2f, 1, Cp),                           # f32
        "wout": _pad2(p["wout_t"], Cp, O).astype(jnp.bfloat16),   # compact O columns
        "bout": p["bout"],                                 # f32, (1, O)
    }


# ---------------------------------------------------------------------------
# Synthetic parameters + pure-JAX reference (unfolded, unpadded, f32)
# ---------------------------------------------------------------------------
def init_params(key, in_channels, res_channels, out_channels, eps=1e-5):
    C, R, O = in_channels, res_channels, out_channels
    ks = jax.random.split(key, 16)

    def linear(kw, kb, fan_in, fan_out):
        bound = 1.0 / jnp.sqrt(fan_in)
        w = jax.random.uniform(kw, (fan_in, fan_out), jnp.float32, -bound, bound)
        b = jax.random.uniform(kb, (1, fan_out), jnp.float32, -bound, bound)
        return w, b

    w1_t, b1 = linear(ks[0], ks[1], C, C)
    w2_t, b2 = linear(ks[2], ks[3], C, C)
    wsc_t, bsc = linear(ks[4], ks[5], C + R, C)
    wout_t, bout = linear(ks[6], ks[7], C, O)

    def bn(kg, kb, km, kv):
        gamma = 1.0 + 0.1 * jax.random.normal(kg, (1, C), jnp.float32)
        beta = 0.1 * jax.random.normal(kb, (1, C), jnp.float32)
        mean = 0.1 * jax.random.normal(km, (1, C), jnp.float32)
        var = 1.0 + 0.05 * jax.random.uniform(kv, (1, C), jnp.float32)
        scale = gamma / jnp.sqrt(var + eps)
        shift = beta - mean * scale
        return scale, shift

    bn1_scale, bn1_shift = bn(ks[8], ks[9], ks[10], ks[11])
    bn2_scale, bn2_shift = bn(ks[12], ks[13], ks[14], ks[15])

    return {
        "w1_t": w1_t, "b1": b1, "bn1_scale": bn1_scale, "bn1_shift": bn1_shift,
        "w2_t": w2_t, "b2": b2, "bn2_scale": bn2_scale, "bn2_shift": bn2_shift,
        "wsc_x_t": wsc_t[:C], "wsc_j_t": wsc_t[C:], "bsc": bsc,
        "wout_t": wout_t, "bout": bout,
    }


def branch_ref(x, joint_sc, p):
    """Pure-JAX reference of the eval-mode PyTorch forward (no folding/padding)."""
    h = x @ p["w1_t"] + p["b1"]
    h = jnp.maximum(h * p["bn1_scale"] + p["bn1_shift"], 0.0)
    h = h @ p["w2_t"] + p["b2"]
    h = jnp.maximum(h * p["bn2_scale"] + p["bn2_shift"], 0.0)
    a = jnp.concatenate([x, joint_sc], axis=-1) @ jnp.concatenate(
        [p["wsc_x_t"], p["wsc_j_t"]], axis=0) + p["bsc"]
    return (h + a) @ p["wout_t"] + p["bout"]


if __name__ == "__main__":
    C, R, O = 32, 16, 24   # in_channels, res_channels, out_channels

    key = jax.random.PRNGKey(0)
    kx, kj, kp = jax.random.split(key, 3)
    params = init_params(kp, C, R, O)
    kparams = fold_and_pad_params(params, C, R, O)

    def run_and_check(N):
        x = jax.random.normal(jax.random.fold_in(kx, N), (N, C), jnp.float32)
        joint_sc = jax.random.normal(jax.random.fold_in(kj, N), (N, R), jnp.float32)
        y = branch_forward(x, joint_sc, kparams, out_channels=O)
        y = jax.block_until_ready(y)
        y_ref = branch_ref(x, joint_sc, params)
        assert y.shape == (N, O)
        rel_err = jnp.max(jnp.abs(y - y_ref)) / (jnp.max(jnp.abs(y_ref)) + 1e-6)
        assert rel_err < 2e-2, f"Pallas output mismatch (rel_err={float(rel_err)})"

    run_and_check(16)   # exact multiple: 2 grid steps of 8 rows (multi-step path)
    run_and_check(20)   # ragged batch: exercises zero-pad + row-slice path

    print("KERNEL_OK")
</pallas_src>

<mosaic_0001>
module attributes {stable_mosaic.version = 11 : i64} {
  func.func @branch_kernel(%arg0: i32, %arg1: memref<8x32xf32, #tpu.memory_space<vmem>>, %arg2: memref<8x16xf32, #tpu.memory_space<vmem>>, %arg3: memref<32x256xbf16, #tpu.memory_space<vmem>>, %arg4: memref<16x128xbf16, #tpu.memory_space<vmem>>, %arg5: memref<1x256xf32, #tpu.memory_space<vmem>>, %arg6: memref<128x128xbf16, #tpu.memory_space<vmem>>, %arg7: memref<1x128xf32, #tpu.memory_space<vmem>>, %arg8: memref<128x24xbf16, #tpu.memory_space<vmem>>, %arg9: memref<1x24xf32, #tpu.memory_space<vmem>>, %arg10: memref<8x24xf32, #tpu.memory_space<vmem>>) attributes {dimension_semantics = [#tpu.dimension_semantics<parallel>], iteration_bounds = array<i64: 2>, scalar_prefetch = 0 : i64, scratch_operands = 0 : i64, tpu.core_type = #tpu.core_type<tc>, window_params = [{transform_indices = @transform_0, window_bounds = array<i64: 8, 32>}, {transform_indices = @transform_1, window_bounds = array<i64: 8, 16>}, {pipeline_mode = #tpu.pipeline_mode<synchronous>, transform_indices = @transform_2, window_bounds = array<i64: 32, 256>}, {pipeline_mode = #tpu.pipeline_mode<synchronous>, transform_indices = @transform_3, window_bounds = array<i64: 16, 128>}, {pipeline_mode = #tpu.pipeline_mode<synchronous>, transform_indices = @transform_4, window_bounds = array<i64: 1, 256>}, {pipeline_mode = #tpu.pipeline_mode<synchronous>, transform_indices = @transform_5, window_bounds = array<i64: 128, 128>}, {pipeline_mode = #tpu.pipeline_mode<synchronous>, transform_indices = @transform_6, window_bounds = array<i64: 1, 128>}, {pipeline_mode = #tpu.pipeline_mode<synchronous>, transform_indices = @transform_7, window_bounds = array<i64: 128, 24>}, {pipeline_mode = #tpu.pipeline_mode<synchronous>, transform_indices = @transform_8, window_bounds = array<i64: 1, 24>}, {transform_indices = @transform_9, window_bounds = array<i64: 8, 24>}]} {
    %c0 = arith.constant 0 : index
    %c0_0 = arith.constant 0 : index
    %0 = vector.load %arg1[%c0, %c0_0] : memref<8x32xf32, #tpu.memory_space<vmem>>, vector<8x32xf32>
    %1 = arith.truncf %0 : vector<8x32xf32> to vector<8x32xbf16>
    %c0_1 = arith.constant 0 : index
    %c0_2 = arith.constant 0 : index
    %2 = vector.load %arg2[%c0_1, %c0_2] : memref<8x16xf32, #tpu.memory_space<vmem>>, vector<8x16xf32>
    %3 = arith.truncf %2 : vector<8x16xf32> to vector<8x16xbf16>
    %c0_3 = arith.constant 0 : index
    %c0_4 = arith.constant 0 : index
    %4 = vector.load %arg3[%c0_3, %c0_4] : memref<32x256xbf16, #tpu.memory_space<vmem>>, vector<32x256xbf16>
    %cst = arith.constant dense<0.000000e+00> : vector<8x256xf32>
    %5 = tpu.matmul %1, %4, %cst {dimension_numbers = #tpu.dot_dimension_numbers<[1], [0], [0], [1], [0, 0, 1, 1], [], []>} : vector<8x32xbf16>, vector<32x256xbf16>, vector<8x256xf32> -> vector<8x256xf32>
    %c0_5 = arith.constant 0 : index
    %c0_6 = arith.constant 0 : index
    %6 = vector.load %arg5[%c0_5, %c0_6] : memref<1x256xf32, #tpu.memory_space<vmem>>, vector<1x256xf32>
    %7 = vector.broadcast %6 : vector<1x256xf32> to vector<8x256xf32>
    %8 = arith.addf %5, %7 : vector<8x256xf32>
    %9 = vector.extract_strided_slice %8 {offsets = [0, 0], sizes = [8, 128], strides = [1, 1]} : vector<8x256xf32> to vector<8x128xf32>
    %cst_7 = arith.constant 0.000000e+00 : f32
    %10 = vector.broadcast %cst_7 : f32 to vector<8x128xf32>
    %11 = arith.maximumf %9, %10 : vector<8x128xf32>
    %12 = vector.extract_strided_slice %8 {offsets = [0, 128], sizes = [8, 128], strides = [1, 1]} : vector<8x256xf32> to vector<8x128xf32>
    %c0_8 = arith.constant 0 : index
    %c0_9 = arith.constant 0 : index
    %13 = vector.load %arg4[%c0_8, %c0_9] : memref<16x128xbf16, #tpu.memory_space<vmem>>, vector<16x128xbf16>
    %cst_10 = arith.constant dense<0.000000e+00> : vector<8x128xf32>
    %14 = tpu.matmul %3, %13, %cst_10 {dimension_numbers = #tpu.dot_dimension_numbers<[1], [0], [0], [1], [0, 0, 1, 1], [], []>} : vector<8x16xbf16>, vector<16x128xbf16>, vector<8x128xf32> -> vector<8x128xf32>
    %15 = arith.addf %12, %14 : vector<8x128xf32>
    %16 = arith.truncf %11 : vector<8x128xf32> to vector<8x128xbf16>
    %c0_11 = arith.constant 0 : index
    %c0_12 = arith.constant 0 : index
    %17 = vector.load %arg6[%c0_11, %c0_12] : memref<128x128xbf16, #tpu.memory_space<vmem>>, vector<128x128xbf16>
    %cst_13 = arith.constant dense<0.000000e+00> : vector<8x128xf32>
    %18 = tpu.matmul %16, %17, %cst_13 {dimension_numbers = #tpu.dot_dimension_numbers<[1], [0], [0], [1], [0, 0, 1, 1], [], []>} : vector<8x128xbf16>, vector<128x128xbf16>, vector<8x128xf32> -> vector<8x128xf32>
    %c0_14 = arith.constant 0 : index
    %c0_15 = arith.constant 0 : index
    %19 = vector.load %arg7[%c0_14, %c0_15] : memref<1x128xf32, #tpu.memory_space<vmem>>, vector<1x128xf32>
    %20 = vector.broadcast %19 : vector<1x128xf32> to vector<8x128xf32>
    %21 = arith.addf %18, %20 : vector<8x128xf32>
    %cst_16 = arith.constant 0.000000e+00 : f32
    %22 = vector.broadcast %cst_16 : f32 to vector<8x128xf32>
    %23 = arith.maximumf %21, %22 : vector<8x128xf32>
    %24 = arith.addf %23, %15 : vector<8x128xf32>
    %25 = arith.truncf %24 : vector<8x128xf32> to vector<8x128xbf16>
    %c0_17 = arith.constant 0 : index
    %c0_18 = arith.constant 0 : index
    %26 = vector.load %arg8[%c0_17, %c0_18] : memref<128x24xbf16, #tpu.memory_space<vmem>>, vector<128x24xbf16>
    %cst_19 = arith.constant dense<0.000000e+00> : vector<8x24xf32>
    %27 = tpu.matmul %25, %26, %cst_19 {dimension_numbers = #tpu.dot_dimension_numbers<[1], [0], [0], [1], [0, 0, 1, 1], [], []>} : vector<8x128xbf16>, vector<128x24xbf16>, vector<8x24xf32> -> vector<8x24xf32>
    %c0_20 = arith.constant 0 : index
    %c0_21 = arith.constant 0 : index
    %28 = vector.load %arg9[%c0_20, %c0_21] : memref<1x24xf32, #tpu.memory_space<vmem>>, vector<1x24xf32>
    %29 = vector.broadcast %28 : vector<1x24xf32> to vector<8x24xf32>
    %30 = arith.addf %27, %29 : vector<8x24xf32>
    %c0_22 = arith.constant 0 : index
    %c0_23 = arith.constant 0 : index
    %31 = vector.load %arg10[%c0_22, %c0_23] : memref<8x24xf32, #tpu.memory_space<vmem>>, vector<8x24xf32>
    tpu.vector_store %arg10[%c0_22, %c0_23], %30 {strides = array<i32>} : memref<8x24xf32, #tpu.memory_space<vmem>>, vector<8x24xf32>,
    return
  }
  func.func @transform_0(%arg0: i32) -> (i32, i32) {
    %c0_i32 = arith.constant 0 : i32
    %c0_i32_0 = arith.constant 0 : i32
    return %arg0, %c0_i32 : i32, i32
  }
  func.func @transform_1(%arg0: i32) -> (i32, i32) {
    %c0_i32 = arith.constant 0 : i32
    %c0_i32_0 = arith.constant 0 : i32
    return %arg0, %c0_i32 : i32, i32
  }
  func.func @transform_2(%arg0: i32) -> (i32, i32) {
    %c0_i32 = arith.constant 0 : i32
    %c0_i32_0 = arith.constant 0 : i32
    %c0_i32_1 = arith.constant 0 : i32
    return %c0_i32, %c0_i32_0 : i32, i32
  }
  func.func @transform_3(%arg0: i32) -> (i32, i32) {
    %c0_i32 = arith.constant 0 : i32
    %c0_i32_0 = arith.constant 0 : i32
    %c0_i32_1 = arith.constant 0 : i32
    return %c0_i32, %c0_i32_0 : i32, i32
  }
  func.func @transform_4(%arg0: i32) -> (i32, i32) {
    %c0_i32 = arith.constant 0 : i32
    %c0_i32_0 = arith.constant 0 : i32
    %c0_i32_1 = arith.constant 0 : i32
    return %c0_i32, %c0_i32_0 : i32, i32
  }
  func.func @transform_5(%arg0: i32) -> (i32, i32) {
    %c0_i32 = arith.constant 0 : i32
    %c0_i32_0 = arith.constant 0 : i32
    %c0_i32_1 = arith.constant 0 : i32
    return %c0_i32, %c0_i32_0 : i32, i32
  }
  func.func @transform_6(%arg0: i32) -> (i32, i32) {
    %c0_i32 = arith.constant 0 : i32
    %c0_i32_0 = arith.constant 0 : i32
    %c0_i32_1 = arith.constant 0 : i32
    return %c0_i32, %c0_i32_0 : i32, i32
  }
  func.func @transform_7(%arg0: i32) -> (i32, i32) {
    %c0_i32 = arith.constant 0 : i32
    %c0_i32_0 = arith.constant 0 : i32
    %c0_i32_1 = arith.constant 0 : i32
    return %c0_i32, %c0_i32_0 : i32, i32
  }
  func.func @transform_8(%arg0: i32) -> (i32, i32) {
    %c0_i32 = arith.constant 0 : i32
    %c0_i32_0 = arith.constant 0 : i32
    %c0_i32_1 = arith.constant 0 : i32
    return %c0_i32, %c0_i32_0 : i32, i32
  }
  func.func @transform_9(%arg0: i32) -> (i32, i32) {
    %c0_i32 = arith.constant 0 : i32
    %c0_i32_0 = arith.constant 0 : i32
    return %arg0, %c0_i32 : i32, i32
  }
}

</mosaic_0001>

<llo_original>
// kernel: tpu_custom_call.1
$region0: #{tpu_custom_call.1}
  #allocation0 [shape = 'u32[]', space=smem, size = 0x4, offset = 0x4, fixed_abs, tag = 'smem constant byte address 0x4 - core index']
  #allocation1 [shape = 'u32[144,128]{1,0:T(1,128)}', space=vmem, size = 0x12000, scoped, tag = 'internal scratch']
  %s0 = inlined_call_operand.vmem [shape: f32[16,32], index: 0, kind: input, shape index: {}]
  %s1 = inlined_call_operand.hbm [shape: f32[16,16], index: 1, kind: input, shape index: {}]
  %s2 = inlined_call_operand.hbm [shape: bf16[32,256], index: 2, kind: input, shape index: {}]
  %s3 = inlined_call_operand.hbm [shape: bf16[16,128], index: 3, kind: input, shape index: {}]
  %s4 = inlined_call_operand.vmem [shape: f32[1,256], index: 4, kind: input, shape index: {}]
  %s5 = inlined_call_operand.vmem [shape: bf16[128,128], index: 5, kind: input, shape index: {}]
  %s6 = inlined_call_operand.vmem [shape: f32[1,128], index: 6, kind: input, shape index: {}]
  %s7 = inlined_call_operand.vmem [shape: bf16[128,24], index: 7, kind: input, shape index: {}]
  %s8 = inlined_call_operand.vmem [shape: f32[1,24], index: 8, kind: input, shape index: {}]
  %s9 = inlined_call_operand.hbm [shape: f32[16,24], index: 9, kind: output, shape index: {}]
  %s10 = sld [smem:[#allocation0]]
  $region81: #{tpu_custom_call.1} parent=0
    _
  %s12 = ssub.s32 1, %s10
  %s13 = scalar_select 0, %s12, %s10
  $region1: #{tpu_custom_call.1} parent=0
    #allocation2 [shape = 'u8[8192]{0}', space=vmem, size = 0x2000, scoped, tag = 'input window, operand 1']
    #allocation3 [shape = 's32[2]{0}', space=sflag, size = 0x8, scoped, tag = 'scoped memory for tpu_custom_call.1']
    #allocation4 [shape = 's32[2]{0}', space=sflag, size = 0x8, scoped, tag = 'scoped memory for tpu_custom_call.1']
    #allocation5 [shape = 'u8[16384]{0}', space=vmem, size = 0x4000, scoped, tag = 'input window, operand 2, single buffered']
    #allocation6 [shape = 's32[1]{0}', space=sflag, size = 0x4, scoped, tag = 'scoped memory for tpu_custom_call.1']
    #allocation7 [shape = 'u8[4096]{0}', space=vmem, size = 0x1000, scoped, tag = 'input window, operand 3, single buffered']
    #allocation8 [shape = 'u8[8192]{0}', space=vmem, size = 0x2000, scoped, tag = 'output window, operand 0']
    %14 = vsyncpa [#allocation3], 0
    %s15 = scalar_lea.sflag [#allocation3], 1
    %16 = vsyncpa %s15, 0
    %17 = vsyncpa [#allocation6], 0
    %18 = vsyncpa [#allocation4], 0
    %s19 = scalar_lea.sflag [#allocation4], 1
    %20 = vsyncpa %s19, 0
    loop: start=0, step=1, limit=4
    $region2: #{tpu_custom_call.1} parent=1 // loop_pre_header
      _
    $region3: #{tpu_custom_call.1} parent=1 // loop_header
      %s22 = sphi 0, %s26
      %p23 = scmp.ge.s32.totalorder %s22, 4
      %s32 = sphi 0, %s34
      %s35 = sphi 0, %s32
      %s36 = sphi 0, %s35
      %s52 = sphi 0, %s36
      %s58 = sphi 0, %s60
      %s61 = sphi 0, %s58
      %s62 = sphi 0, %s61
      %s78 = sphi 0, %s62
      %s82 = sphi 0, %s82
      %s84 = sphi 0, %s82
      %s85 = sphi 0, %s84
      %s99 = sphi 0, %s85
      %s103 = sphi 0, %s103
      %s105 = sphi 0, %s103
      %s106 = sphi 0, %s105
      %s120 = sphi 0, %s106
      %s124 = sphi 0, %s124
      %s126 = sphi 0, %s124
      %s127 = sphi 0, %s126
      %s141 = sphi 0, %s127
      %s145 = sphi 0, %s145
      %s147 = sphi 0, %s145
      %s148 = sphi 0, %s147
      %s162 = sphi 0, %s148
      %s166 = sphi 0, %s166
      %s168 = sphi 0, %s166
      %s169 = sphi 0, %s168
      %s183 = sphi 0, %s169
      %s187 = sphi 0, %s187
      %s189 = sphi 0, %s187
      %s190 = sphi 0, %s189
      %s204 = sphi 0, %s190
      %s208 = sphi 0, %s208
      %s210 = sphi 0, %s208
      %s211 = sphi 0, %s210
      %s225 = sphi 0, %s211
      %s231 = sphi 0, %s233
      %s234 = sphi 0, %s231
      %s235 = sphi 0, %s234
      %s251 = sphi 0, %s235
    $region4: #{tpu_custom_call.1} parent=1 // loop_header_branch
      %25 = sbr.rel (%p23) target = $region8
    $region5: #{tpu_custom_call.1} parent=1 // loop_body
      %s27 = ssub.s32 %s22, 1
      %s28 = ssub.s32 %s22, 2
      %s29 = sadd.s32 %s22, 1
      %s30 = ssub.s32 %s22, %s29
      %p31 = scmp.eq.s32.totalorder %s30, 0
      %s33 = sadd.s32 %s32, 1
      %s34 = scalar_select %p31, %s32, %s33
      %p37 = pneg %p31
      %p38 = scmp.eq.s32.totalorder %s22, 1
      %p39 = por %p37, %p38
      %p40 = scmp.ne.s32.totalorder %s32, %s35
      %p41 = scmp.eq.s32.totalorder %s22, 0
      %p42 = por %p40, %p41
      %p43 = scmp.ne.s32.totalorder %s32, %s35
      %p44 = scmp.eq.s32.totalorder %s27, 1
      %p45 = por %p43, %p44
      %p46 = scmp.ne.s32.totalorder %s35, %s36
      %p47 = scmp.eq.s32.totalorder %s27, 0
      %p48 = por %p46, %p47
      %p49 = scmp.ne.s32.totalorder %s35, %s36
      %p50 = scmp.eq.s32.totalorder %s28, 1
      %p51 = por %p49, %p50
      %p53 = scmp.ne.s32.totalorder %s36, %s52
      %p54 = scmp.eq.s32.totalorder %s28, 0
      %p55 = por %p53, %p54
      %s56 = ssub.s32 %s22, %s29
      %p57 = scmp.eq.s32.totalorder %s56, 0
      %s59 = sadd.s32 %s58, 1
      %s60 = scalar_select %p57, %s58, %s59
      %p63 = pneg %p57
      %p64 = scmp.eq.s32.totalorder %s22, 1
      %p65 = por %p63, %p64
      %p66 = scmp.ne.s32.totalorder %s58, %s61
      %p67 = scmp.eq.s32.totalorder %s22, 0
      %p68 = por %p66, %p67
      %p69 = scmp.ne.s32.totalorder %s58, %s61
      %p70 = scmp.eq.s32.totalorder %s27, 1
      %p71 = por %p69, %p70
      %p72 = scmp.ne.s32.totalorder %s61, %s62
      %p73 = scmp.eq.s32.totalorder %s27, 0
      %p74 = por %p72, %p73
      %p75 = scmp.ne.s32.totalorder %s61, %s62
      %p76 = scmp.eq.s32.totalorder %s28, 1
      %p77 = por %p75, %p76
      %p79 = scmp.ne.s32.totalorder %s62, %s78
      %p80 = scmp.eq.s32.totalorder %s28, 0
      %p81 = por %p79, %p80
      %s83 = sadd.s32 %s82, 1
      %p86 = scmp.eq.s32.totalorder %s22, 1
      %p87 = scmp.ne.s32.totalorder %s82, %s84
      %p88 = scmp.eq.s32.totalorder %s22, 0
      %p89 = por %p87, %p88
      %p90 = scmp.ne.s32.totalorder %s82, %s84
      %p91 = scmp.eq.s32.totalorder %s27, 1
      %p92 = por %p90, %p91
      %p93 = scmp.ne.s32.totalorder %s84, %s85
      %p94 = scmp.eq.s32.totalorder %s27, 0
      %p95 = por %p93, %p94
      %p96 = scmp.ne.s32.totalorder %s84, %s85
      %p97 = scmp.eq.s32.totalorder %s28, 1
      %p98 = por %p96, %p97
      %p100 = scmp.ne.s32.totalorder %s85, %s99
      %p101 = scmp.eq.s32.totalorder %s28, 0
      %p102 = por %p100, %p101
      %s104 = sadd.s32 %s103, 1
      %p107 = scmp.eq.s32.totalorder %s22, 1
      %p108 = scmp.ne.s32.totalorder %s103, %s105
      %p109 = scmp.eq.s32.totalorder %s22, 0
      %p110 = por %p108, %p109
      %p111 = scmp.ne.s32.totalorder %s103, %s105
      %p112 = scmp.eq.s32.totalorder %s27, 1
      %p113 = por %p111, %p112
      %p114 = scmp.ne.s32.totalorder %s105, %s106
      %p115 = scmp.eq.s32.totalorder %s27, 0
      %p116 = por %p114, %p115
      %p117 = scmp.ne.s32.totalorder %s105, %s106
      %p118 = scmp.eq.s32.totalorder %s28, 1
      %p119 = por %p117, %p118
      %p121 = scmp.ne.s32.totalorder %s106, %s120
      %p122 = scmp.eq.s32.totalorder %s28, 0
      %p123 = por %p121, %p122
      %s125 = sadd.s32 %s124, 1
      %p128 = scmp.eq.s32.totalorder %s22, 1
      %p129 = scmp.ne.s32.totalorder %s124, %s126
      %p130 = scmp.eq.s32.totalorder %s22, 0
      %p131 = por %p129, %p130
      %p132 = scmp.ne.s32.totalorder %s124, %s126
      %p133 = scmp.eq.s32.totalorder %s27, 1
      %p134 = por %p132, %p133
      %p135 = scmp.ne.s32.totalorder %s126, %s127
      %p136 = scmp.eq.s32.totalorder %s27, 0
      %p137 = por %p135, %p136
      %p138 = scmp.ne.s32.totalorder %s126, %s127
      %p139 = scmp.eq.s32.totalorder %s28, 1
      %p140 = por %p138, %p139
      %p142 = scmp.ne.s32.totalorder %s127, %s141
      %p143 = scmp.eq.s32.totalorder %s28, 0
      %p144 = por %p142, %p143
      %s146 = sadd.s32 %s145, 1
      %p149 = scmp.eq.s32.totalorder %s22, 1
      %p150 = scmp.ne.s32.totalorder %s145, %s147
      %p151 = scmp.eq.s32.totalorder %s22, 0
      %p152 = por %p150, %p151
      %p153 = scmp.ne.s32.totalorder %s145, %s147
      %p154 = scmp.eq.s32.totalorder %s27, 1
      %p155 = por %p153, %p154
      %p156 = scmp.ne.s32.totalorder %s147, %s148
      %p157 = scmp.eq.s32.totalorder %s27, 0
      %p158 = por %p156, %p157
      %p159 = scmp.ne.s32.totalorder %s147, %s148
      %p160 = scmp.eq.s32.totalorder %s28, 1
      %p161 = por %p159, %p160
      %p163 = scmp.ne.s32.totalorder %s148, %s162
      %p164 = scmp.eq.s32.totalorder %s28, 0
      %p165 = por %p163, %p164
      %s167 = sadd.s32 %s166, 1
      %p170 = scmp.eq.s32.totalorder %s22, 1
      %p171 = scmp.ne.s32.totalorder %s166, %s168
      %p172 = scmp.eq.s32.totalorder %s22, 0
      %p173 = por %p171, %p172
      %p174 = scmp.ne.s32.totalorder %s166, %s168
      %p175 = scmp.eq.s32.totalorder %s27, 1
      %p176 = por %p174, %p175
      %p177 = scmp.ne.s32.totalorder %s168, %s169
      %p178 = scmp.eq.s32.totalorder %s27, 0
      %p179 = por %p177, %p178
      %p180 = scmp.ne.s32.totalorder %s168, %s169
      %p181 = scmp.eq.s32.totalorder %s28, 1
      %p182 = por %p180, %p181
      %p184 = scmp.ne.s32.totalorder %s169, %s183
      %p185 = scmp.eq.s32.totalorder %s28, 0
      %p186 = por %p184, %p185
      %s188 = sadd.s32 %s187, 1
      %p191 = scmp.eq.s32.totalorder %s22, 1
      %p192 = scmp.ne.s32.totalorder %s187, %s189
      %p193 = scmp.eq.s32.totalorder %s22, 0
      %p194 = por %p192, %p193
      %p195 = scmp.ne.s32.totalorder %s187, %s189
      %p196 = scmp.eq.s32.totalorder %s27, 1
      %p197 = por %p195, %p196
      %p198 = scmp.ne.s32.totalorder %s189, %s190
      %p199 = scmp.eq.s32.totalorder %s27, 0
      %p200 = por %p198, %p199
      %p201 = scmp.ne.s32.totalorder %s189, %s190
      %p202 = scmp.eq.s32.totalorder %s28, 1
      %p203 = por %p201, %p202
      %p205 = scmp.ne.s32.totalorder %s190, %s204
      %p206 = scmp.eq.s32.totalorder %s28, 0
      %p207 = por %p205, %p206
      %s209 = sadd.s32 %s208, 1
      %p212 = scmp.eq.s32.totalorder %s22, 1
      %p213 = scmp.ne.s32.totalorder %s208, %s210
      %p214 = scmp.eq.s32.totalorder %s22, 0
      %p215 = por %p213, %p214
      %p216 = scmp.ne.s32.totalorder %s208, %s210
      %p217 = scmp.eq.s32.totalorder %s27, 1
      %p218 = por %p216, %p217
      %p219 = scmp.ne.s32.totalorder %s210, %s211
      %p220 = scmp.eq.s32.totalorder %s27, 0
      %p221 = por %p219, %p220
      %p222 = scmp.ne.s32.totalorder %s210, %s211
      %p223 = scmp.eq.s32.totalorder %s28, 1
      %p224 = por %p222, %p223
      %p226 = scmp.ne.s32.totalorder %s211, %s225
      %p227 = scmp.eq.s32.totalorder %s28, 0
      %p228 = por %p226, %p227
      %s229 = ssub.s32 %s22, %s29
      %p230 = scmp.eq.s32.totalorder %s229, 0
      %s232 = sadd.s32 %s231, 1
      %s233 = scalar_select %p230, %s231, %s232
      %p236 = pneg %p230
      %p237 = scmp.eq.s32.totalorder %s22, 1
      %p238 = por %p236, %p237
      %p239 = scmp.ne.s32.totalorder %s231, %s234
      %p240 = scmp.eq.s32.totalorder %s22, 0
      %p241 = por %p239, %p240
      %p242 = scmp.ne.s32.totalorder %s231, %s234
      %p243 = scmp.eq.s32.totalorder %s27, 1
      %p244 = por %p242, %p243
      %p245 = scmp.ne.s32.totalorder %s234, %s235
      %p246 = scmp.eq.s32.totalorder %s27, 0
      %p247 = por %p245, %p246
      %p248 = scmp.ne.s32.totalorder %s234, %s235
      %p249 = scmp.eq.s32.totalorder %s28, 1
      %p250 = por %p248, %p249
      %p252 = scmp.ne.s32.totalorder %s235, %s251
      %p253 = scmp.eq.s32.totalorder %s28, 0
      %p254 = por %p252, %p253
      %p255 = scmp.le.s32.totalorder 1, %s22
      %p256 = scmp.lt.s32.totalorder %s22, 3
      %p257 = pnand %p255, %p256
      %p258 = pneg %p257
      // Predicated region
      $region9: #{tpu_custom_call.1} parent=5 // pred_check
        _
      $region10: #{tpu_custom_call.1} parent=5 // pred_check_branch
        %260 = sbr.rel (%p257) target = $region12
      $region11: #{tpu_custom_call.1} parent=5 // pred_region
        %s261 = ssub.s32 %s22, 1
        // Predicated region
        $region13: #{tpu_custom_call.1} parent=11 // pred_check
          %p262 = pneg %p95
        $region14: #{tpu_custom_call.1} parent=11 // pred_check_branch
          %264 = sbr.rel (%p262) target = $region16
        $region15: #{tpu_custom_call.1} parent=11 // pred_region
          %s266 = ssub.s32 512, 512
          %267 = vsyncadd [#allocation6], %s266
          %s268 = sshll.u32 [#allocation5], 4
          %s269 = int_to_ptr.vmem [resolvable:$true] %s268
          %274 = dma.hbm_to_vmem [thread:$0]  %s2, 512, %s269, [#allocation6], 128, 128, 8
        $region16: #{tpu_custom_call.1} parent=11 // pred_fallthru
          _
        // Predicated region
        $region17: #{tpu_custom_call.1} parent=11 // pred_check
          %p275 = pneg %p116
        $region18: #{tpu_custom_call.1} parent=11 // pred_check_branch
          %277 = sbr.rel (%p275) target = $region20
        $region19: #{tpu_custom_call.1} parent=11 // pred_region
          %s279 = ssub.s32 128, 128
          %280 = vsyncadd [#allocation6], %s279
          %s281 = sshll.u32 [#allocation7], 4
          %s282 = int_to_ptr.vmem [resolvable:$true] %s281
          %287 = dma.hbm_to_vmem [thread:$0]  %s3, 128, %s282, [#allocation6], 64, 64, 4
        $region20: #{tpu_custom_call.1} parent=11 // pred_fallthru
          _
        // Predicated region
        $region21: #{tpu_custom_call.1} parent=11 // pred_check
          %p288 = pneg %p137
        $region22: #{tpu_custom_call.1} parent=11 // pred_check_branch
          %290 = sbr.rel (%p288) target = $region24
        $region23: #{tpu_custom_call.1} parent=11 // pred_region
          _
        $region24: #{tpu_custom_call.1} parent=11 // pred_fallthru
          _
        // Predicated region
        $region25: #{tpu_custom_call.1} parent=11 // pred_check
          %p291 = pneg %p158
        $region26: #{tpu_custom_call.1} parent=11 // pred_check_branch
          %293 = sbr.rel (%p291) target = $region28
        $region27: #{tpu_custom_call.1} parent=11 // pred_region
          _
        $region28: #{tpu_custom_call.1} parent=11 // pred_fallthru
          _
        // Predicated region
        $region29: #{tpu_custom_call.1} parent=11 // pred_check
          %p294 = pneg %p179
        $region30: #{tpu_custom_call.1} parent=11 // pred_check_branch
          %296 = sbr.rel (%p294) target = $region32
        $region31: #{tpu_custom_call.1} parent=11 // pred_region
          _
        $region32: #{tpu_custom_call.1} parent=11 // pred_fallthru
          _
        // Predicated region
        $region33: #{tpu_custom_call.1} parent=11 // pred_check
          %p297 = pneg %p200
        $region34: #{tpu_custom_call.1} parent=11 // pred_check_branch
          %299 = sbr.rel (%p297) target = $region36
        $region35: #{tpu_custom_call.1} parent=11 // pred_region
          _
        $region36: #{tpu_custom_call.1} parent=11 // pred_fallthru
          _
        // Predicated region
        $region37: #{tpu_custom_call.1} parent=11 // pred_check
          %p300 = pneg %p221
        $region38: #{tpu_custom_call.1} parent=11 // pred_check_branch
          %302 = sbr.rel (%p300) target = $region40
        $region39: #{tpu_custom_call.1} parent=11 // pred_region
          _
        $region40: #{tpu_custom_call.1} parent=11 // pred_fallthru
          _
      $region12: #{tpu_custom_call.1} parent=5 // pred_fallthru
        _
      %p303 = scmp.lt.s32.totalorder %s22, 2
      // Predicated region
      $region41: #{tpu_custom_call.1} parent=5 // pred_check
        %p304 = pneg %p303
      $region42: #{tpu_custom_call.1} parent=5 // pred_check_branch
        %306 = sbr.rel (%p304) target = $region44
      $region43: #{tpu_custom_call.1} parent=5 // pred_region
        // Predicated region
        $region45: #{tpu_custom_call.1} parent=43 // pred_check
          %p307 = pneg %p42
        $region46: #{tpu_custom_call.1} parent=43 // pred_check_branch
          %309 = sbr.rel (%p307) target = $region48
        $region47: #{tpu_custom_call.1} parent=43 // pred_region
          %p310 = scmp.lt.s32.totalorder %s22, 1
          %s311 = scalar_select %p310, %s22, 1
          %s312 = smul.addr %s311, 8
          %s313 = scalar_lea.vmem %s0, %s312
        $region48: #{tpu_custom_call.1} parent=43 // pred_fallthru
          _
        // Predicated region
        $region49: #{tpu_custom_call.1} parent=43 // pred_check
          %p314 = pneg %p68
        $region50: #{tpu_custom_call.1} parent=43 // pred_check_branch
          %316 = sbr.rel (%p314) target = $region52
        $region51: #{tpu_custom_call.1} parent=43 // pred_region
          %s317 = sand.u32 %s58, 1
          %s318 = scalar_lea.sflag [#allocation3], %s317
          %s319 = sand.u32 %s58, 1
          %s320 = smul.addr %s319, 8
          %s321 = scalar_lea.vmem [#allocation2], %s320
          %s323 = ssub.s32 128, 128
          %324 = vsyncadd %s318, %s323
          %s325 = smul.addr %s22, 128
          %s326 = scalar_lea.hbm %s1, %s325
          %s328 = sshll.u32 %s321, 4
          %s329 = int_to_ptr.vmem [resolvable:$true] %s328
          %331 = dma.hbm_to_vmem [thread:$0]  %s326, 128, %s329, %s318
        $region52: #{tpu_custom_call.1} parent=43 // pred_fallthru
          _
      $region44: #{tpu_custom_call.1} parent=5 // pred_fallthru
        _
      %p332 = scmp.le.s32.totalorder 1, %s22
      %p333 = scmp.lt.s32.totalorder %s22, 3
      %p334 = pnand %p332, %p333
      %p335 = pneg %p334
      // Predicated region
      $region53: #{tpu_custom_call.1} parent=5 // pred_check
        _
      $region54: #{tpu_custom_call.1} parent=5 // pred_check_branch
        %337 = sbr.rel (%p334) target = $region56
      $region55: #{tpu_custom_call.1} parent=5 // pred_region
        %s338 = ssub.s32 %s22, 1
        %s339 = sand.u32 %s61, 1
        %s340 = scalar_lea.sflag [#allocation3], %s339
        %s341 = sand.u32 %s61, 1
        %s342 = smul.addr %s341, 8
        %s343 = scalar_lea.vmem [#allocation2], %s342
        // Predicated region
        $region57: #{tpu_custom_call.1} parent=55 // pred_check
          %p344 = pneg %p74
        $region58: #{tpu_custom_call.1} parent=55 // pred_check_branch
          %346 = sbr.rel (%p344) target = $region60
        $region59: #{tpu_custom_call.1} parent=55 // pred_region
          %347 = dma.done %s340, 128
        $region60: #{tpu_custom_call.1} parent=55 // pred_fallthru
          _
        // Predicated region
        $region61: #{tpu_custom_call.1} parent=55 // pred_check
          %p348 = pneg %p95
        $region62: #{tpu_custom_call.1} parent=55 // pred_check_branch
          %350 = sbr.rel (%p348) target = $region64
        $region63: #{tpu_custom_call.1} parent=55 // pred_region
          %351 = dma.done [#allocation6], 512
        $region64: #{tpu_custom_call.1} parent=55 // pred_fallthru
          _
        // Predicated region
        $region65: #{tpu_custom_call.1} parent=55 // pred_check
          %p352 = pneg %p116
        $region66: #{tpu_custom_call.1} parent=55 // pred_check_branch
          %354 = sbr.rel (%p352) target = $region68
        $region67: #{tpu_custom_call.1} parent=55 // pred_region
          %355 = dma.done [#allocation6], 128
        $region68: #{tpu_custom_call.1} parent=55 // pred_fallthru
          _
        %p356 = scmp.lt.s32.totalorder %s27, 1
        %s357 = scalar_select %p356, %s27, 1
        %s358 = smul.addr %s357, 8
        %s359 = scalar_lea.vmem %s0, %s358
        %p360 = pneg %p48
        %p361 = pneg %p45
        %s362 = sand.u32 %s61, 1
        %s363 = scalar_lea.sflag [#allocation3], %s362
        %s364 = sand.u32 %s61, 1
        %s365 = smul.addr %s364, 8
        %s366 = scalar_lea.vmem [#allocation2], %s365
        %p367 = pneg %p74
        %p368 = pneg %p71
        %p369 = pneg %p95
        %p370 = pneg %p92
        %p371 = pneg %p116
        %p372 = pneg %p113
        %p373 = pneg %p137
        %p374 = pneg %p134
        %p375 = pneg %p158
        %p376 = pneg %p155
        %p377 = pneg %p179
        %p378 = pneg %p176
        %p379 = pneg %p200
        %p380 = pneg %p197
        %p381 = pneg %p221
        %p382 = pneg %p218
        %p383 = pneg %p247
        %p384 = pneg %p244
        %s385 = sand.u32 %s234, 1
        %s386 = scalar_lea.sflag [#allocation4], %s385
        %s387 = sand.u32 %s234, 1
        %s388 = smul.addr %s387, 8
        %s389 = scalar_lea.vmem [#allocation8], %s388
        %p390 = scmp.lt.s32.totalorder %s27, 1
        %s391 = scalar_select %p390, %s27, 1
        %s392 = smul.addr %s391, 8
        %s393 = scalar_lea.vmem %s0, %s392
        %v395 = vld [vmem:[%s393] sm:$0xff]
        %v396 = vpack.c.bf16 %v395, %v395
        %v397 = vld [vmem:[%s343] sm:$0xff]
        %v398 = vpack.c.bf16 %v397, %v397
        %v399 = vld [vmem:[#allocation5] sm:$0xff]
        %v400 = vld [vmem:[#allocation5 + $0x8] sm:$0xff]
        %v401 = vld [vmem:[#allocation5 + $0x10] sm:$0xff]
        %v402 = vld [vmem:[#allocation5 + $0x18] sm:$0xff]
        %v403 = vld [vmem:[%s4] sm:$0x3]
        %v405 = vlaneseq
        %v406 = vshrl.u32 %v405, 7
        %v407 = vsub.s32 0, %v406
        %v408 = vrot.slane %v403, %v407
        %v409 = vlaneseq
        %v410 = vshrl.u32 %v409, 7
        %v411 = vsub.s32 1, %v410
        %v412 = vrot.slane %v403, %v411
        %v419 = vunpack.c.l.b16 %v399
        %v420 = vunpack.c.h.b16 %v399
        %v421 = vunpack.c.l.b16 %v400
        %v422 = vunpack.c.h.b16 %v400
        %v423 = vunpack.c.l.b16 %v401
        %v424 = vunpack.c.h.b16 %v401
        %v425 = vunpack.c.l.b16 %v402
        %v426 = vunpack.c.h.b16 %v402
        %v427 = vpack.c.b16 %v421, %v419
        %v428 = vpack.c.b16 %v422, %v420
        %v429 = vpack.c.b16 %v425, %v423
        %v430 = vpack.c.b16 %v426, %v424
        %vm435 = vcmask 261120
        %v437 = vsel %vm435, %v396, 0
        %439 = vmatprep.subr.bf16.mxu0 %v428
        %440 = vmatpush1.bf16.msra.mxu0 %v427
        %441 = vmatprep.subr.bf16.mxu0 %v430
        %442 = vmatpush1.bf16.msra.mxu0 %v429
        %443 = vmatprep.subr.bf16.mxu0 0
        %444 = vmatpush1.bf16.msra.mxu0 0
        %445 = vmatprep.subr.bf16.mxu0 0
        %446 = vmatpush1.bf16.msra.mxu0 0
        %447 = vmatprep.subr.bf16.mxu0 0
        %448 = vmatpush1.bf16.msra.mxu0 0
        %449 = vmatprep.subr.bf16.mxu0 0
        %450 = vmatpush1.bf16.msra.mxu0 0
        %451 = vmatprep.subr.bf16.mxu0 0
        %452 = vmatpush1.bf16.msra.mxu0 0
        %453 = vmatprep.subr.bf16.mxu0 0
        %454 = vmatpush1.bf16.msra.mxu0 0
        %455 = vmatprep.subr.bf16.mxu0 0
        %456 = vmatpush1.bf16.msra.mxu0 0
        %457 = vmatprep.subr.bf16.mxu0 0
        %458 = vmatpush1.bf16.msra.mxu0 0
        %459 = vmatprep.subr.bf16.mxu0 0
        %460 = vmatpush1.bf16.msra.mxu0 0
        %461 = vmatprep.subr.bf16.mxu0 0
        %462 = vmatpush1.bf16.msra.mxu0 0
        %463 = vmatprep.subr.bf16.mxu0 0
        %464 = vmatpush1.bf16.msra.mxu0 0
        %465 = vmatprep.subr.bf16.mxu0 0
        %466 = vmatpush1.bf16.msra.mxu0 0
        %467 = vmatprep.subr.bf16.mxu0 0
        %468 = vmatpush1.bf16.msra.mxu0 0
        %469 = vmatprep.subr.bf16.mxu0 0
        %470 = vmatpush1.bf16.msra.mxu0 0
        %471 = vmatprep.mubr.bf16.mxu0 0
        %472 = vmatmul.mubr.bf16.gmra.mrb[0].mxu0 %v437
        %v473 = vpop.f32.mrb[0].mxu0
        %v474 = vadd.f32 %v408, %v473
        %v475 = vpop.f32.mrb[0].mxu0
        %v476 = vadd.f32 %v412, %v475
        %v477 = vpop.f32.mrb[0].mxu0
        %v478 = vpop.f32.mrb[0].mxu0
        %479 = vdwg.mxu0
        %v480 = vmax.f32 %v474, 0.0
        %v481 = vld [vmem:[#allocation7] sm:$0xf]
        %v482 = vld [vmem:[#allocation7 + $0x4] sm:$0xf]
        %v485 = vunpack.c.l.b16 %v481
        %v486 = vunpack.c.l.b16 %v482
        %v487 = vpack.c.b16 %v486, %v485
        %vm489 = vcmask 130048
        %v491 = vsel %vm489, %v398, 0
        %493 = vmatprep.subr.bf16.mxu0 0
        %494 = vmatpush1.bf16.msra.mxu0 %v487
        %495 = vmatprep.subr.bf16.mxu0 0
        %496 = vmatpush1.bf16.msra.mxu0 0
        %497 = vmatprep.subr.bf16.mxu0 0
        %498 = vmatpush1.bf16.msra.mxu0 0
        %499 = vmatprep.subr.bf16.mxu0 0
        %500 = vmatpush1.bf16.msra.mxu0 0
        %501 = vmatprep.subr.bf16.mxu0 0
        %502 = vmatpush1.bf16.msra.mxu0 0
        %503 = vmatprep.subr.bf16.mxu0 0
        %504 = vmatpush1.bf16.msra.mxu0 0
        %505 = vmatprep.subr.bf16.mxu0 0
        %506 = vmatpush1.bf16.msra.mxu0 0
        %507 = vmatprep.subr.bf16.mxu0 0
        %508 = vmatpush1.bf16.msra.mxu0 0
        %509 = vmatprep.subr.bf16.mxu0 0
        %510 = vmatpush1.bf16.msra.mxu0 0
        %511 = vmatprep.subr.bf16.mxu0 0
        %512 = vmatpush1.bf16.msra.mxu0 0
        %513 = vmatprep.subr.bf16.mxu0 0
        %514 = vmatpush1.bf16.msra.mxu0 0
        %515 = vmatprep.subr.bf16.mxu0 0
        %516 = vmatpush1.bf16.msra.mxu0 0
        %517 = vmatprep.subr.bf16.mxu0 0
        %518 = vmatpush1.bf16.msra.mxu0 0
        %519 = vmatprep.subr.bf16.mxu0 0
        %520 = vmatpush1.bf16.msra.mxu0 0
        %521 = vmatprep.subr.bf16.mxu0 0
        %522 = vmatpush1.bf16.msra.mxu0 0
        %523 = vmatprep.subr.bf16.mxu0 0
        %524 = vmatpush1.bf16.msra.mxu0 0
        %525 = vmatprep.mubr.bf16.mxu0 0
        %526 = vmatmul.mubr.bf16.gmra.mrb[0].mxu0 %v491
        %v527 = vpop.f32.mrb[0].mxu0
        %v528 = vadd.f32 0.0, %v527
        %v529 = vpop.f32.mrb[0].mxu0
        %v530 = vpop.f32.mrb[0].mxu0
        %v531 = vpop.f32.mrb[0].mxu0
        %532 = vdwg.mxu0
        %v533 = vadd.f32 %v476, %v528
        %v534 = vpack.c.bf16 %v480, %v480
        %v535 = vld [vmem:[%s5] sm:$0xf]
        %v536 = vld [vmem:[%s5 + $0x4] sm:$0xf]
        %v537 = vld [vmem:[%s5 + $0x8] sm:$0xf]
        %v538 = vld [vmem:[%s5 + $0xc] sm:$0xf]
        %v539 = vld [vmem:[%s5 + $0x10] sm:$0xf]
        %v540 = vld [vmem:[%s5 + $0x14] sm:$0xf]
        %v541 = vld [vmem:[%s5 + $0x18] sm:$0xf]
        %v542 = vld [vmem:[%s5 + $0x1c] sm:$0xf]
        %v543 = vld [vmem:[%s5 + $0x20] sm:$0xf]
        %v544 = vld [vmem:[%s5 + $0x24] sm:$0xf]
        %v545 = vld [vmem:[%s5 + $0x28] sm:$0xf]
        %v546 = vld [vmem:[%s5 + $0x2c] sm:$0xf]
        %v547 = vld [vmem:[%s5 + $0x30] sm:$0xf]
        %v548 = vld [vmem:[%s5 + $0x34] sm:$0xf]
        %v549 = vld [vmem:[%s5 + $0x38] sm:$0xf]
        %v550 = vld [vmem:[%s5 + $0x3c] sm:$0xf]
        %v551 = vld [vmem:[%s6] sm:$0x1]
        %v553 = vlaneseq
        %v554 = vshrl.u32 %v553, 7
        %v555 = vsub.s32 0, %v554
        %v556 = vrot.slane %v551, %v555
        %v574 = vunpack.c.l.b16 %v535
        %v575 = vunpack.c.l.b16 %v536
        %v576 = vunpack.c.l.b16 %v537
        %v577 = vunpack.c.l.b16 %v538
        %v578 = vunpack.c.l.b16 %v539
        %v579 = vunpack.c.l.b16 %v540
        %v580 = vunpack.c.l.b16 %v541
        %v581 = vunpack.c.l.b16 %v542
        %v582 = vunpack.c.l.b16 %v543
        %v583 = vunpack.c.l.b16 %v544
        %v584 = vunpack.c.l.b16 %v545
        %v585 = vunpack.c.l.b16 %v546
        %v586 = vunpack.c.l.b16 %v547
        %v587 = vunpack.c.l.b16 %v548
        %v588 = vunpack.c.l.b16 %v549
        %v589 = vunpack.c.l.b16 %v550
        %v590 = vpack.c.b16 %v575, %v574
        %v591 = vpack.c.b16 %v577, %v576
        %v592 = vpack.c.b16 %v579, %v578
        %v593 = vpack.c.b16 %v581, %v580
        %v594 = vpack.c.b16 %v583, %v582
        %v595 = vpack.c.b16 %v585, %v584
        %v596 = vpack.c.b16 %v587, %v586
        %v597 = vpack.c.b16 %v589, %v588
        %606 = vmatprep.subr.bf16.mxu0 0
        %607 = vmatpush1.bf16.msra.mxu0 %v590
        %608 = vmatprep.subr.bf16.mxu0 0
        %609 = vmatpush1.bf16.msra.mxu0 %v591
        %610 = vmatprep.subr.bf16.mxu0 0
        %611 = vmatpush1.bf16.msra.mxu0 %v592
        %612 = vmatprep.subr.bf16.mxu0 0
        %613 = vmatpush1.bf16.msra.mxu0 %v593
        %614 = vmatprep.subr.bf16.mxu0 0
        %615 = vmatpush1.bf16.msra.mxu0 %v594
        %616 = vmatprep.subr.bf16.mxu0 0
        %617 = vmatpush1.bf16.msra.mxu0 %v595
        %618 = vmatprep.subr.bf16.mxu0 0
        %619 = vmatpush1.bf16.msra.mxu0 %v596
        %620 = vmatprep.subr.bf16.mxu0 0
        %621 = vmatpush1.bf16.msra.mxu0 %v597
        %622 = vmatprep.subr.bf16.mxu0 0
        %623 = vmatpush1.bf16.msra.mxu0 0
        %624 = vmatprep.subr.bf16.mxu0 0
        %625 = vmatpush1.bf16.msra.mxu0 0
        %626 = vmatprep.subr.bf16.mxu0 0
        %627 = vmatpush1.bf16.msra.mxu0 0
        %628 = vmatprep.subr.bf16.mxu0 0
        %629 = vmatpush1.bf16.msra.mxu0 0
        %630 = vmatprep.subr.bf16.mxu0 0
        %631 = vmatpush1.bf16.msra.mxu0 0
        %632 = vmatprep.subr.bf16.mxu0 0
        %633 = vmatpush1.bf16.msra.mxu0 0
        %634 = vmatprep.subr.bf16.mxu0 0
        %635 = vmatpush1.bf16.msra.mxu0 0
        %636 = vmatprep.subr.bf16.mxu0 0
        %637 = vmatpush1.bf16.msra.mxu0 0
        %638 = vmatprep.mubr.bf16.mxu0 0
        %639 = vmatmul.mubr.bf16.gmra.mrb[0].mxu0 %v534
        %v640 = vpop.f32.mrb[0].mxu0
        %v641 = vadd.f32 %v556, %v640
        %v642 = vpop.f32.mrb[0].mxu0
        %v643 = vpop.f32.mrb[0].mxu0
        %v644 = vpop.f32.mrb[0].mxu0
        %645 = vdwg.mxu0
        %v646 = vmax.f32 %v641, 0.0
        %v647 = vadd.f32 %v646, %v533
        %v648 = vpack.c.bf16 %v647, %v647
        %v649 = vld [vmem:[%s7] sm:$0xf]
        %v650 = vld [vmem:[%s7 + $0x4] sm:$0xf]
        %v651 = vld [vmem:[%s7 + $0x8] sm:$0xf]
        %v652 = vld [vmem:[%s7 + $0xc] sm:$0xf]
        %v653 = vld [vmem:[%s7 + $0x10] sm:$0xf]
        %v654 = vld [vmem:[%s7 + $0x14] sm:$0xf]
        %v655 = vld [vmem:[%s7 + $0x18] sm:$0xf]
        %v656 = vld [vmem:[%s7 + $0x1c] sm:$0xf]
        %v657 = vld [vmem:[%s7 + $0x20] sm:$0xf]
        %v658 = vld [vmem:[%s7 + $0x24] sm:$0xf]
        %v659 = vld [vmem:[%s7 + $0x28] sm:$0xf]
        %v660 = vld [vmem:[%s7 + $0x2c] sm:$0xf]
        %v661 = vld [vmem:[%s7 + $0x30] sm:$0xf]
        %v662 = vld [vmem:[%s7 + $0x34] sm:$0xf]
        %v663 = vld [vmem:[%s7 + $0x38] sm:$0xf]
        %v664 = vld [vmem:[%s7 + $0x3c] sm:$0xf]
        %v665 = vld [vmem:[%s8] sm:$0x1]
        %v667 = vlaneseq
        %v668 = vshrl.u32 %v667, 7
        %v669 = vsub.s32 0, %v668
        %v670 = vrot.slane %v665, %v669
        %v688 = vunpack.c.l.b16 %v649
        %v689 = vunpack.c.l.b16 %v650
        %v690 = vunpack.c.l.b16 %v651
        %v691 = vunpack.c.l.b16 %v652
        %v692 = vunpack.c.l.b16 %v653
        %v693 = vunpack.c.l.b16 %v654
        %v694 = vunpack.c.l.b16 %v655
        %v695 = vunpack.c.l.b16 %v656
        %v696 = vunpack.c.l.b16 %v657
        %v697 = vunpack.c.l.b16 %v658
        %v698 = vunpack.c.l.b16 %v659
        %v699 = vunpack.c.l.b16 %v660
        %v700 = vunpack.c.l.b16 %v661
        %v701 = vunpack.c.l.b16 %v662
        %v702 = vunpack.c.l.b16 %v663
        %v703 = vunpack.c.l.b16 %v664
        %v704 = vpack.c.b16 %v689, %v688
        %v705 = vpack.c.b16 %v691, %v690
        %v706 = vpack.c.b16 %v693, %v692
        %v707 = vpack.c.b16 %v695, %v694
        %v708 = vpack.c.b16 %v697, %v696
        %v709 = vpack.c.b16 %v699, %v698
        %v710 = vpack.c.b16 %v701, %v700
        %v711 = vpack.c.b16 %v703, %v702
        %720 = vmatprep.subr.bf16.mxu0 0
        %721 = vmatpush1.bf16.msra.mxu0 %v704
        %722 = vmatprep.subr.bf16.mxu0 0
        %723 = vmatpush1.bf16.msra.mxu0 %v705
        %724 = vmatprep.subr.bf16.mxu0 0
        %725 = vmatpush1.bf16.msra.mxu0 %v706
        %726 = vmatprep.subr.bf16.mxu0 0
        %727 = vmatpush1.bf16.msra.mxu0 %v707
        %728 = vmatprep.subr.bf16.mxu0 0
        %729 = vmatpush1.bf16.msra.mxu0 %v708
        %730 = vmatprep.subr.bf16.mxu0 0
        %731 = vmatpush1.bf16.msra.mxu0 %v709
        %732 = vmatprep.subr.bf16.mxu0 0
        %733 = vmatpush1.bf16.msra.mxu0 %v710
        %734 = vmatprep.subr.bf16.mxu0 0
        %735 = vmatpush1.bf16.msra.mxu0 %v711
        %736 = vmatprep.subr.bf16.mxu0 0
        %737 = vmatpush1.bf16.msra.mxu0 0
        %738 = vmatprep.subr.bf16.mxu0 0
        %739 = vmatpush1.bf16.msra.mxu0 0
        %740 = vmatprep.subr.bf16.mxu0 0
        %741 = vmatpush1.bf16.msra.mxu0 0
        %742 = vmatprep.subr.bf16.mxu0 0
        %743 = vmatpush1.bf16.msra.mxu0 0
        %744 = vmatprep.subr.bf16.mxu0 0
        %745 = vmatpush1.bf16.msra.mxu0 0
        %746 = vmatprep.subr.bf16.mxu0 0
        %747 = vmatpush1.bf16.msra.mxu0 0
        %748 = vmatprep.subr.bf16.mxu0 0
        %749 = vmatpush1.bf16.msra.mxu0 0
        %750 = vmatprep.subr.bf16.mxu0 0
        %751 = vmatpush1.bf16.msra.mxu0 0
        %752 = vmatprep.mubr.bf16.mxu0 0
        %753 = vmatmul.mubr.bf16.gmra.mrb[0].mxu0 %v648
        %v754 = vpop.f32.mrb[0].mxu0
        %v755 = vadd.f32 %v670, %v754
        %v756 = vpop.f32.mrb[0].mxu0
        %v757 = vpop.f32.mrb[0].mxu0
        %v758 = vpop.f32.mrb[0].mxu0
        %759 = vdwg.mxu0
        %vm760 = vcmask 195584
        %761 = vst.msk [vmem:[%s389] sm:$0xff] %vm760, %v755
        %s762 = sand.u32 %s234, 1
        %s763 = scalar_lea.sflag [#allocation4], %s762
        %s764 = sand.u32 %s234, 1
        %s765 = smul.addr %s764, 8
        %s766 = scalar_lea.vmem [#allocation8], %s765
        // Predicated region
        $region69: #{tpu_custom_call.1} parent=55 // pred_check
          %p767 = pneg %p244
        $region70: #{tpu_custom_call.1} parent=55 // pred_check_branch
          %769 = sbr.rel (%p767) target = $region72
        $region71: #{tpu_custom_call.1} parent=55 // pred_region
          %s771 = ssub.s32 128, 128
          %772 = vsyncadd %s763, %s771
          %s773 = smul.addr %s27, 128
          %s774 = scalar_lea.hbm %s9, %s773
          %s776 = sshll.u32 %s766, 4
          %s777 = int_to_ptr.vmem [resolvable:$true] %s776
          %779 = dma.vmem_to_hbm [thread:$0]  %s777, 128, %s774, %s763
        $region72: #{tpu_custom_call.1} parent=55 // pred_fallthru
          _
      $region56: #{tpu_custom_call.1} parent=5 // pred_fallthru
        _
      %p780 = scmp.le.s32.totalorder 2, %s22
      // Predicated region
      $region73: #{tpu_custom_call.1} parent=5 // pred_check
        %p781 = pneg %p780
      $region74: #{tpu_custom_call.1} parent=5 // pred_check_branch
        %783 = sbr.rel (%p781) target = $region76
      $region75: #{tpu_custom_call.1} parent=5 // pred_region
        %s784 = ssub.s32 %s22, 2
        // Predicated region
        $region77: #{tpu_custom_call.1} parent=75 // pred_check
          %p785 = pneg %p250
        $region78: #{tpu_custom_call.1} parent=75 // pred_check_branch
          %787 = sbr.rel (%p785) target = $region80
        $region79: #{tpu_custom_call.1} parent=75 // pred_region
          %s788 = sand.u32 %s235, 1
          %s789 = scalar_lea.sflag [#allocation4], %s788
          %s790 = sand.u32 %s235, 1
          %s791 = smul.addr %s790, 8
          %s792 = scalar_lea.vmem [#allocation8], %s791
          %793 = dma.done %s789, 128
        $region80: #{tpu_custom_call.1} parent=75 // pred_fallthru
          _
      $region76: #{tpu_custom_call.1} parent=5 // pred_fallthru
        _
    $region6: #{tpu_custom_call.1} parent=1 // loop_footer
      %s26 = sadd.s32 1, %s22
    $region7: #{tpu_custom_call.1} parent=1 // loop_footer_branch
      %21 = sbr.rel target = $region3
    $region8: #{tpu_custom_call.1} parent=1 // loop_exit
      _
    %794 = vsyncpa [#allocation3], 1
    %s795 = scalar_lea.sflag [#allocation3], 1
    %796 = vsyncpa %s795, 1
    %797 = vsyncpa [#allocation6], 1
    %798 = vsyncpa [#allocation4], 1
    %s799 = scalar_lea.sflag [#allocation4], 1
    %800 = vsyncpa %s799, 1

</llo_original>
